<compile_context>
chip_gen: v7x
topology: tpu7x:2x2x1
jax: 0.10.0
libtpu: 0.0.40
codegen_flags: <defaults>
</compile_context>

<pallas_src>
import functools

import jax
import jax.numpy as jnp
from jax import lax
from jax.experimental import pallas as pl
from jax.experimental.pallas import tpu as pltpu

_LANE = 128
_SUBLANE = 8
_NEG = -1e30          # "minus infinity" bias for padded logit lanes


def _round_up(n, m):
    return (n + m - 1) // m * m


def _choose_time_block(T, max_blk=32):
    tb = min(T, max_blk)
    while T % tb:
        tb -= 1
    return tb


def _vmem_limit_bytes():
    # v5e/v6e: 128 MiB physical VMEM -> ~96 MiB budget; v7x: 64 MiB -> ~48 MiB.
    try:
        cap = pltpu.get_tpu_info().vmem_capacity_bytes
    except Exception:
        cap = 64 * 1024 * 1024
    return int(max(32 * 1024 * 1024, min(cap * 3 // 4, 100 * 1024 * 1024)))


# --------------------------------------------------------------------------- #
# Kernels
# --------------------------------------------------------------------------- #
def _rnn_cell_kernel(comb_ref, w_ref, b_ref, out_ref, hid_ref):
    """Single RNN step (module forward): one K=(Ip+Hp) matmul over the fused weight.
    fused = [new_hidden | logits]; padded logit lanes carry ~-1e30 via the bias."""
    fused = (
        jnp.dot(comb_ref[...], w_ref[...], preferred_element_type=jnp.float32)
        + b_ref[...]
    )
    hp = hid_ref.shape[-1]
    new_h = fused[:, :hp]
    logits = fused[:, hp:]
    m = jnp.max(logits, axis=-1, keepdims=True)
    shifted = logits - m
    lse = jnp.log(jnp.sum(jnp.exp(shifted), axis=-1, keepdims=True))
    out_ref[...] = (shifted - lse).astype(out_ref.dtype)
    hid_ref[...] = new_h.astype(hid_ref.dtype)


def _xpre_kernel(x_ref, wx_ref, b_ref, xh_ref, xo_ref):
    """Parallel pre-pass: one [T_blk*Bp, Ip] @ [Ip, Hp+Op] matmul + fused bias.
    Splits the result into the recurrence input (XH) and the logit input (XO)."""
    res = (
        jnp.dot(x_ref[...], wx_ref[...], preferred_element_type=jnp.float32)
        + b_ref[...]
    )
    hp = xh_ref.shape[-1]
    xh_ref[...] = res[:, :hp]
    xo_ref[...] = res[:, hp:]


def _recur_kernel(xh_ref, h0_ref, whh_ref, hseq_ref, hfin_ref):
    """Serial recurrence only: per step h <- h @ Wh_h + XH[t]; records the incoming
    hidden h_{t-1} so logits + log-softmax can run as a fully parallel post pass.

    hfin_ref is the VMEM-resident carry (constant out index_map): initialized from h0
    at block 0, written back to HBM once at the end of the grid.
    NOTE: padded batch rows (B..Bp) accumulate bias terms across steps; they never mix
    with real rows (matmuls are row-wise) and are sliced away in the wrapper.
    """
    blk = pl.program_id(0)

    @pl.when(blk == 0)
    def _():
        hfin_ref[...] = h0_ref[...]

    bp = h0_ref.shape[0]
    t_blk = xh_ref.shape[0] // bp
    w = whh_ref[...]                                    # (Hp, Hp), VMEM-resident

    def step(i, h):
        r = pl.multiple_of(i * bp, bp)
        hseq_ref[pl.ds(r, bp), :] = h                   # h_{t-1} for the post pass
        new_h = (
            jnp.dot(h.astype(w.dtype), w, preferred_element_type=jnp.float32)
            + xh_ref[pl.ds(r, bp), :]
        )
        return new_h

    hfin_ref[...] = lax.fori_loop(0, t_blk, step, hfin_ref[...], unroll=True)


def _logits_kernel(hseq_ref, xo_ref, who_ref, out_ref):
    """Parallel post-pass: logits = XO + h_{t-1} @ Wh_o, then log-softmax (lane axis)."""
    w = who_ref[...]
    logits = (
        jnp.dot(hseq_ref[...].astype(w.dtype), w, preferred_element_type=jnp.float32)
        + xo_ref[...]
    )
    m = jnp.max(logits, axis=-1, keepdims=True)
    shifted = logits - m
    lse = jnp.log(jnp.sum(jnp.exp(shifted), axis=-1, keepdims=True))
    out_ref[...] = (shifted - lse).astype(out_ref.dtype)


# --------------------------------------------------------------------------- #
# Params (nn.Linear-equivalent; weights stored transposed: W is [in, out])
# --------------------------------------------------------------------------- #
def init_params(key, input_size, hidden_size, output_size):
    k1, k2, k3, k4 = jax.random.split(key, 4)
    in_features = input_size + hidden_size
    bound = 1.0 / (in_features ** 0.5)
    u = functools.partial(jax.random.uniform, minval=-bound, maxval=bound,
                          dtype=jnp.float32)
    return {
        "wh": u(k1, (in_features, hidden_size)),   # i2h
        "bh": u(k2, (1, hidden_size)),
        "wo": u(k3, (in_features, output_size)),   # i2o
        "bo": u(k4, (1, output_size)),
    }


def fuse_and_pad_params(params, input_size, hidden_size, output_size,
                        param_dtype=jnp.float32):
    """Fuse i2h/i2o into one weight over the concatenated feature axis and pad to
    (8,128)-dense tiles. Done once at setup, never in the per-step path."""
    I, H, O = input_size, hidden_size, output_size
    Ip = _round_up(I, _LANE)
    Hp = _round_up(H, _LANE)
    Op = _round_up(O, _LANE)
    N = Hp + Op

    wh, bh, wo, bo = params["wh"], params["bh"], params["wo"], params["bo"]

    w_all = jnp.zeros((Ip + Hp, N), jnp.float32)
    w_all = w_all.at[:I, :H].set(wh[:I]).at[:I, Hp:Hp + O].set(wo[:I])
    w_all = w_all.at[Ip:Ip + H, :H].set(wh[I:]).at[Ip:Ip + H, Hp:Hp + O].set(wo[I:])
    w_all = w_all.astype(param_dtype)

    b = jnp.zeros((1, N), jnp.float32)
    b = b.at[:, :H].set(bh)
    b = b.at[:, Hp:].set(_NEG)                 # padded logit lanes -> exp() == 0
    b = b.at[:, Hp:Hp + O].set(bo)

    return {
        "w_all": w_all,                        # (Ip+Hp, Hp+Op): single-step fused weight
        "wx": w_all[:Ip],                      # (Ip, Hp+Op): input rows  -> pre-pass
        "whh": w_all[Ip:, :Hp],                # (Hp, Hp):    hidden rows -> recurrence
        "who": w_all[Ip:, Hp:],                # (Hp, Op):    hidden rows -> post-pass
        "b": b,                                # f32 fused bias (with -1e30 pad lanes)
        "dims": (I, H, O, Ip, Hp, Op),
        "param_dtype": param_dtype,
    }


# --------------------------------------------------------------------------- #
# Wrappers
# --------------------------------------------------------------------------- #
def rnn_forward(input_tensor, hidden_tensor, fused):
    """Pallas equivalent of RNN.forward -> (log_softmax(i2o(cat)), i2h(cat)).
    x and h are concatenated along lanes so one K=(Ip+Hp) matmul feeds the MXU."""
    I, H, O, Ip, Hp, Op = fused["dims"]
    pdt = fused["param_dtype"]
    B = input_tensor.shape[0]
    Bp = _round_up(B, _SUBLANE)

    comb = jnp.zeros((Bp, Ip + Hp), pdt)
    comb = comb.at[:B, :I].set(input_tensor.astype(pdt))
    comb = comb.at[:B, Ip:Ip + H].set(hidden_tensor.astype(pdt))

    out_p, hid_p = pl.pallas_call(
        _rnn_cell_kernel,
        out_shape=(
            jax.ShapeDtypeStruct((Bp, Op), jnp.float32),   # log-softmax output
            jax.ShapeDtypeStruct((Bp, Hp), jnp.float32),   # new hidden
        ),
        in_specs=[pl.BlockSpec(memory_space=pltpu.VMEM)] * 3,
        out_specs=(
            pl.BlockSpec(memory_space=pltpu.VMEM),
            pl.BlockSpec(memory_space=pltpu.VMEM),
        ),
        compiler_params=pltpu.CompilerParams(vmem_limit_bytes=_vmem_limit_bytes()),
    )(comb, fused["w_all"], fused["b"])

    return out_p[:B, :O], hid_p[:B, :H]


def rnn_forward_sequence(x_seq, h0, fused, time_block=32):
    """Apply the RNN cell over a [T, B, I] sequence.
    Three pallas_calls: parallel pre-pass, serial (time-blocked) recurrence,
    parallel log-softmax post-pass."""
    I, H, O, Ip, Hp, Op = fused["dims"]
    pdt = fused["param_dtype"]
    T, B = x_seq.shape[0], x_seq.shape[1]
    Bp = _round_up(B, _SUBLANE)
    T_blk = _choose_time_block(T, time_block)
    n_blk = T // T_blk
    M = T * Bp             # total rows for the parallel passes
    Mb = T_blk * Bp        # rows per time block

    vmem_limit = _vmem_limit_bytes()

    # Pad once (outside every kernel) to lane/sublane-dense layout, then flatten
    # (T, Bp) -> rows so the parallel passes run one big-M matmul per block.
    xp = jnp.zeros((T, Bp, Ip), pdt).at[:, :B, :I].set(x_seq.astype(pdt))
    x2d = xp.reshape(M, Ip)
    h0p = jnp.zeros((Bp, Hp), jnp.float32).at[:B, :H].set(h0)

    # ---- parallel pre-pass: XH = x@Wx_h + bh,  XO = x@Wx_o + bo' -------------
    xh2d, xo2d = pl.pallas_call(
        _xpre_kernel,
        grid=(n_blk,),
        in_specs=[
            pl.BlockSpec((Mb, Ip), lambda i: (i, 0)),
            pl.BlockSpec((Ip, Hp + Op), lambda i: (0, 0)),   # VMEM-resident weight
            pl.BlockSpec((1, Hp + Op), lambda i: (0, 0)),    # VMEM-resident bias
        ],
        out_specs=(
            pl.BlockSpec((Mb, Hp), lambda i: (i, 0)),
            pl.BlockSpec((Mb, Op), lambda i: (i, 0)),
        ),
        out_shape=(
            jax.ShapeDtypeStruct((M, Hp), jnp.float32),
            jax.ShapeDtypeStruct((M, Op), jnp.float32),
        ),
        compiler_params=pltpu.CompilerParams(
            dimension_semantics=("parallel",),
            vmem_limit_bytes=vmem_limit),
    )(x2d, fused["wx"], fused["b"])

    # ---- serial recurrence (time-blocked, hidden carried on-chip) ------------
    hseq2d, h_fin = pl.pallas_call(
        _recur_kernel,
        grid=(n_blk,),
        in_specs=[
            pl.BlockSpec((Mb, Hp), lambda i: (i, 0)),        # XH time block
            pl.BlockSpec((Bp, Hp), lambda i: (0, 0)),        # h0 (read at block 0)
            pl.BlockSpec((Hp, Hp), lambda i: (0, 0)),        # Wh_h, VMEM-resident
        ],
        out_specs=(
            pl.BlockSpec((Mb, Hp), lambda i: (i, 0)),        # h_{t-1} sequence
            pl.BlockSpec((Bp, Hp), lambda i: (0, 0)),        # resident carry / final h
        ),
        out_shape=(
            jax.ShapeDtypeStruct((M, Hp), jnp.float32),
            jax.ShapeDtypeStruct((Bp, Hp), jnp.float32),
        ),
        compiler_params=pltpu.CompilerParams(
            dimension_semantics=("arbitrary",),              # time recurrence
            vmem_limit_bytes=vmem_limit),
    )(xh2d, h0p, fused["whh"])

    # ---- parallel post-pass: logits + log-softmax -----------------------------
    out2d = pl.pallas_call(
        _logits_kernel,
        grid=(n_blk,),
        in_specs=[
            pl.BlockSpec((Mb, Hp), lambda i: (i, 0)),
            pl.BlockSpec((Mb, Op), lambda i: (i, 0)),
            pl.BlockSpec((Hp, Op), lambda i: (0, 0)),        # Wh_o, VMEM-resident
        ],
        out_specs=pl.BlockSpec((Mb, Op), lambda i: (i, 0)),
        out_shape=jax.ShapeDtypeStruct((M, Op), pdt),
        compiler_params=pltpu.CompilerParams(
            dimension_semantics=("parallel",),
            vmem_limit_bytes=vmem_limit),
    )(hseq2d, xo2d, fused["who"])

    out_seq = out2d.reshape(T, Bp, Op)[:, :B, :O]
    return out_seq, h_fin[:B, :H]


# --------------------------------------------------------------------------- #
# Demo / correctness check
# --------------------------------------------------------------------------- #
if __name__ == "__main__":
    input_size, hidden_size, output_size = 16, 32, 8
    batch, seq_len = 2, 8

    key = jax.random.PRNGKey(0)
    kp, kx, ks = jax.random.split(key, 3)
    params = init_params(kp, input_size, hidden_size, output_size)

    # plain-JAX reference matching the PyTorch module exactly
    def ref_cell(x, h):
        comb = jnp.concatenate([x, h], axis=1)
        hid = comb @ params["wh"] + params["bh"]
        out = jax.nn.log_softmax(comb @ params["wo"] + params["bo"], axis=1)
        return out, hid

    x = jax.random.normal(kx, (batch, input_size), dtype=jnp.float32)
    h0 = jnp.zeros((batch, hidden_size), dtype=jnp.float32)   # init_hidden, batched
    x_seq = jax.random.normal(ks, (seq_len, batch, input_size), dtype=jnp.float32)

    out_ref1, hid_ref1 = ref_cell(x, h0)
    h_r = h0
    outs_ref = []
    for t in range(seq_len):
        o_t, h_r = ref_cell(x_seq[t], h_r)
        outs_ref.append(o_t)
    out_seq_ref = jnp.stack(outs_ref)
    h_fin_ref = h_r

    # f32: exact-ish check.  bf16: weights/x/out stored in bfloat16, f32 accumulation.
    for pdt, atol, rtol in ((jnp.float32, 1e-4, 1e-4), (jnp.bfloat16, 1e-1, 1e-1)):
        fused = fuse_and_pad_params(params, input_size, hidden_size, output_size,
                                    param_dtype=pdt)

        # --- single step (== RNN.forward) ---
        output, hidden = rnn_forward(x, h0, fused)
        jax.block_until_ready((output, hidden))
        assert jnp.allclose(output, out_ref1, atol=atol, rtol=rtol), f"output {pdt}"
        assert jnp.allclose(hidden, hid_ref1, atol=atol, rtol=rtol), f"hidden {pdt}"

        # --- full sequence (pre-pass / serial recurrence / post-pass) ---
        out_seq, h_fin = rnn_forward_sequence(x_seq, h0, fused)
        jax.block_until_ready((out_seq, h_fin))
        assert jnp.allclose(out_seq, out_seq_ref, atol=atol, rtol=rtol), f"seq {pdt}"
        assert jnp.allclose(h_fin, h_fin_ref, atol=atol, rtol=rtol), f"final h {pdt}"

    print("KERNEL_OK")
</pallas_src>

<mosaic_0001>
module attributes {stable_mosaic.version = 11 : i64} {
  func.func @_rnn_cell_kernel(%arg0: memref<8x256xf32, #tpu.memory_space<vmem>>, %arg1: memref<256x256xf32, #tpu.memory_space<vmem>>, %arg2: memref<1x256xf32, #tpu.memory_space<vmem>>, %arg3: memref<8x128xf32, #tpu.memory_space<vmem>>, %arg4: memref<8x128xf32, #tpu.memory_space<vmem>>) attributes {dimension_semantics = [], scalar_prefetch = 0 : i64, scratch_operands = 0 : i64, tpu.core_type = #tpu.core_type<tc>} {
    %c0 = arith.constant 0 : index
    %c0_0 = arith.constant 0 : index
    %0 = vector.load %arg0[%c0, %c0_0] : memref<8x256xf32, #tpu.memory_space<vmem>>, vector<8x256xf32>
    %c0_1 = arith.constant 0 : index
    %c0_2 = arith.constant 0 : index
    %1 = vector.load %arg1[%c0_1, %c0_2] : memref<256x256xf32, #tpu.memory_space<vmem>>, vector<256x256xf32>
    %cst = arith.constant dense<0.000000e+00> : vector<8x256xf32>
    %2 = tpu.matmul %0, %1, %cst {dimension_numbers = #tpu.dot_dimension_numbers<[1], [0], [0], [1], [0, 0, 1, 1], [], []>} : vector<8x256xf32>, vector<256x256xf32>, vector<8x256xf32> -> vector<8x256xf32>
    %c0_3 = arith.constant 0 : index
    %c0_4 = arith.constant 0 : index
    %3 = vector.load %arg2[%c0_3, %c0_4] : memref<1x256xf32, #tpu.memory_space<vmem>>, vector<1x256xf32>
    %4 = vector.broadcast %3 : vector<1x256xf32> to vector<8x256xf32>
    %5 = arith.addf %2, %4 : vector<8x256xf32>
    %6 = vector.extract_strided_slice %5 {offsets = [0, 0], sizes = [8, 128], strides = [1, 1]} : vector<8x256xf32> to vector<8x128xf32>
    %7 = vector.extract_strided_slice %5 {offsets = [0, 128], sizes = [8, 128], strides = [1, 1]} : vector<8x256xf32> to vector<8x128xf32>
    %cst_5 = arith.constant dense<0xFF800000> : vector<8xf32>
    %8 = vector.multi_reduction <maximumf>, %7, %cst_5 [1] : vector<8x128xf32> to vector<8xf32>
    %9 = vector.shape_cast %8 : vector<8xf32> to vector<8x1xf32>
    %10 = vector.broadcast %9 : vector<8x1xf32> to vector<8x128xf32>
    %11 = arith.subf %7, %10 : vector<8x128xf32>
    %12 = math.exp %11 : vector<8x128xf32>
    %cst_6 = arith.constant dense<0.000000e+00> : vector<8xf32>
    %13 = vector.multi_reduction <add>, %12, %cst_6 [1] : vector<8x128xf32> to vector<8xf32>
    %14 = vector.shape_cast %13 : vector<8xf32> to vector<8x1xf32>
    %15 = math.log %14 : vector<8x1xf32>
    %16 = vector.broadcast %15 : vector<8x1xf32> to vector<8x128xf32>
    %17 = arith.subf %11, %16 : vector<8x128xf32>
    %c0_7 = arith.constant 0 : index
    %c0_8 = arith.constant 0 : index
    %18 = vector.load %arg3[%c0_7, %c0_8] : memref<8x128xf32, #tpu.memory_space<vmem>>, vector<8x128xf32>
    tpu.vector_store %arg3[%c0_7, %c0_8], %17 {strides = array<i32>} : memref<8x128xf32, #tpu.memory_space<vmem>>, vector<8x128xf32>,
    %c0_9 = arith.constant 0 : index
    %c0_10 = arith.constant 0 : index
    %19 = vector.load %arg4[%c0_9, %c0_10] : memref<8x128xf32, #tpu.memory_space<vmem>>, vector<8x128xf32>
    tpu.vector_store %arg4[%c0_9, %c0_10], %6 {strides = array<i32>} : memref<8x128xf32, #tpu.memory_space<vmem>>, vector<8x128xf32>,
    return
  }
}

</mosaic_0001>

<llo_original>
// kernel: tpu_custom_call.1
$region0: #{tpu_custom_call.1}
  #allocation0 [shape = 'u32[]', space=smem, size = 0x4, offset = 0x4, fixed_abs, tag = 'smem constant byte address 0x4 - core index']
  #allocation1 [shape = 'u32[144,128]{1,0:T(1,128)}', space=vmem, size = 0x12000, scoped, tag = 'internal scratch']
  %s0 = inlined_call_operand.hbm [shape: f32[8,256], index: 0, kind: input, shape index: {}]
  %s1 = inlined_call_operand.hbm [shape: f32[256,256], index: 1, kind: input, shape index: {}]
  %s2 = inlined_call_operand.vmem [shape: f32[1,256], index: 2, kind: input, shape index: {}]
  %s3 = inlined_call_operand.hbm [shape: f32[8,128], index: 3, kind: output, shape index: {0}]
  %s4 = inlined_call_operand.hbm [shape: f32[8,128], index: 4, kind: output, shape index: {1}]
  %5 = xla_tuple %s3, %s4
  %s6 = sld [smem:[#allocation0]]
  $region38: #{tpu_custom_call.1} parent=0
    _
  %s8 = ssub.s32 1, %s6
  %s9 = scalar_select 0, %s8, %s6
  $region1: #{tpu_custom_call.1} parent=0
    #allocation2 [shape = 'u8[8192]{0}', space=vmem, size = 0x2000, scoped, tag = 'input window, operand 0, single buffered']
    #allocation3 [shape = 's32[1]{0}', space=sflag, size = 0x4, scoped, tag = 'scoped memory for tpu_custom_call.1']
    #allocation4 [shape = 's32[1]{0}', space=sflag, size = 0x4, scoped, tag = 'scoped memory for tpu_custom_call.1']
    #allocation5 [shape = 'u8[262144]{0}', space=vmem, size = 0x40000, scoped, tag = 'input window, operand 1, single buffered']
    #allocation6 [shape = 's32[1]{0}', space=sflag, size = 0x4, scoped, tag = 'scoped memory for tpu_custom_call.1']
    #allocation7 [shape = 'u8[4096]{0}', space=vmem, size = 0x1000, scoped, tag = 'output window, operand 0, single buffered']
    #allocation8 [shape = 'u8[4096]{0}', space=vmem, size = 0x1000, scoped, tag = 'output window, operand 1, single buffered']
    #allocation9 [shape = 's32[1]{0}', space=sflag, size = 0x4, scoped, tag = 'scoped memory for tpu_custom_call.1']
    %10 = vsyncpa [#allocation3], 0
    %11 = vsyncpa [#allocation6], 0
    %12 = vsyncpa [#allocation4], 0
    %13 = vsyncpa [#allocation9], 0
    // Predicated region
    $region2: #{tpu_custom_call.1} parent=1 // pred_check
      _
    $region3: #{tpu_custom_call.1} parent=1 // pred_check_branch
      %15 = sbr.rel (0) target = $region5
    $region4: #{tpu_custom_call.1} parent=1 // pred_region
      %s17 = ssub.s32 256, 256
      %18 = vsyncadd [#allocation3], %s17
      %s20 = sshll.u32 [#allocation2], 4
      %s21 = int_to_ptr.vmem [resolvable:$true] %s20
      %23 = dma.hbm_to_vmem [thread:$0]  %s0, 256, %s21, [#allocation3]
    $region5: #{tpu_custom_call.1} parent=1 // pred_fallthru
      _
    // Predicated region
    $region6: #{tpu_custom_call.1} parent=1 // pred_check
      _
    $region7: #{tpu_custom_call.1} parent=1 // pred_check_branch
      %25 = sbr.rel (0) target = $region9
    $region8: #{tpu_custom_call.1} parent=1 // pred_region
      %s27 = ssub.s32 8192, 8192
      %28 = vsyncadd [#allocation6], %s27
      %s29 = sshll.u32 [#allocation5], 4
      %s30 = int_to_ptr.vmem [resolvable:$true] %s29
      %35 = dma.hbm_to_vmem [thread:$0]  %s1, 8192, %s30, [#allocation6], 256, 256, 16
    $region9: #{tpu_custom_call.1} parent=1 // pred_fallthru
      _
    // Predicated region
    $region10: #{tpu_custom_call.1} parent=1 // pred_check
      _
    $region11: #{tpu_custom_call.1} parent=1 // pred_check_branch
      %37 = sbr.rel (0) target = $region13
    $region12: #{tpu_custom_call.1} parent=1 // pred_region
      _
    $region13: #{tpu_custom_call.1} parent=1 // pred_fallthru
      _
    // Predicated region
    $region14: #{tpu_custom_call.1} parent=1 // pred_check
      _
    $region15: #{tpu_custom_call.1} parent=1 // pred_check_branch
      %39 = sbr.rel (0) target = $region17
    $region16: #{tpu_custom_call.1} parent=1 // pred_region
      %40 = dma.done [#allocation3], 256
    $region17: #{tpu_custom_call.1} parent=1 // pred_fallthru
      _
    // Predicated region
    $region18: #{tpu_custom_call.1} parent=1 // pred_check
      _
    $region19: #{tpu_custom_call.1} parent=1 // pred_check_branch
      %42 = sbr.rel (0) target = $region21
    $region20: #{tpu_custom_call.1} parent=1 // pred_region
      %43 = dma.done [#allocation6], 8192
    $region21: #{tpu_custom_call.1} parent=1 // pred_fallthru
      _
    %v44 = vld [vmem:[#allocation2] sm:$0xff]
    %v45 = vld [vmem:[#allocation2 + $0x8] sm:$0xff]
    %v46 = vld [vmem:[#allocation5] sm:$0xff]
    %v47 = vld [vmem:[#allocation5 + $0x8] sm:$0xff]
    %v48 = vld [vmem:[#allocation5 + $0x10] sm:$0xff]
    %v49 = vld [vmem:[#allocation5 + $0x18] sm:$0xff]
    %v50 = vld [vmem:[#allocation5 + $0x20] sm:$0xff]
    %v51 = vld [vmem:[#allocation5 + $0x28] sm:$0xff]
    %v52 = vld [vmem:[#allocation5 + $0x30] sm:$0xff]
    %v53 = vld [vmem:[#allocation5 + $0x38] sm:$0xff]
    %v54 = vld [vmem:[#allocation5 + $0x40] sm:$0xff]
    %v55 = vld [vmem:[#allocation5 + $0x48] sm:$0xff]
    %v56 = vld [vmem:[#allocation5 + $0x50] sm:$0xff]
    %v57 = vld [vmem:[#allocation5 + $0x58] sm:$0xff]
    %v58 = vld [vmem:[#allocation5 + $0x60] sm:$0xff]
    %v59 = vld [vmem:[#allocation5 + $0x68] sm:$0xff]
    %v60 = vld [vmem:[#allocation5 + $0x70] sm:$0xff]
    %v61 = vld [vmem:[#allocation5 + $0x78] sm:$0xff]
    %v62 = vld [vmem:[#allocation5 + $0x80] sm:$0xff]
    %v63 = vld [vmem:[#allocation5 + $0x88] sm:$0xff]
    %v64 = vld [vmem:[#allocation5 + $0x90] sm:$0xff]
    %v65 = vld [vmem:[#allocation5 + $0x98] sm:$0xff]
    %v66 = vld [vmem:[#allocation5 + $0xa0] sm:$0xff]
    %v67 = vld [vmem:[#allocation5 + $0xa8] sm:$0xff]
    %v68 = vld [vmem:[#allocation5 + $0xb0] sm:$0xff]
    %v69 = vld [vmem:[#allocation5 + $0xb8] sm:$0xff]
    %v70 = vld [vmem:[#allocation5 + $0xc0] sm:$0xff]
    %v71 = vld [vmem:[#allocation5 + $0xc8] sm:$0xff]
    %v72 = vld [vmem:[#allocation5 + $0xd0] sm:$0xff]
    %v73 = vld [vmem:[#allocation5 + $0xd8] sm:$0xff]
    %v74 = vld [vmem:[#allocation5 + $0xe0] sm:$0xff]
    %v75 = vld [vmem:[#allocation5 + $0xe8] sm:$0xff]
    %v76 = vld [vmem:[#allocation5 + $0xf0] sm:$0xff]
    %v77 = vld [vmem:[#allocation5 + $0xf8] sm:$0xff]
    %v78 = vld [vmem:[#allocation5 + $0x100] sm:$0xff]
    %v79 = vld [vmem:[#allocation5 + $0x108] sm:$0xff]
    %v80 = vld [vmem:[#allocation5 + $0x110] sm:$0xff]
    %v81 = vld [vmem:[#allocation5 + $0x118] sm:$0xff]
    %v82 = vld [vmem:[#allocation5 + $0x120] sm:$0xff]
    %v83 = vld [vmem:[#allocation5 + $0x128] sm:$0xff]
    %v84 = vld [vmem:[#allocation5 + $0x130] sm:$0xff]
    %v85 = vld [vmem:[#allocation5 + $0x138] sm:$0xff]
    %v86 = vld [vmem:[#allocation5 + $0x140] sm:$0xff]
    %v87 = vld [vmem:[#allocation5 + $0x148] sm:$0xff]
    %v88 = vld [vmem:[#allocation5 + $0x150] sm:$0xff]
    %v89 = vld [vmem:[#allocation5 + $0x158] sm:$0xff]
    %v90 = vld [vmem:[#allocation5 + $0x160] sm:$0xff]
    %v91 = vld [vmem:[#allocation5 + $0x168] sm:$0xff]
    %v92 = vld [vmem:[#allocation5 + $0x170] sm:$0xff]
    %v93 = vld [vmem:[#allocation5 + $0x178] sm:$0xff]
    %v94 = vld [vmem:[#allocation5 + $0x180] sm:$0xff]
    %v95 = vld [vmem:[#allocation5 + $0x188] sm:$0xff]
    %v96 = vld [vmem:[#allocation5 + $0x190] sm:$0xff]
    %v97 = vld [vmem:[#allocation5 + $0x198] sm:$0xff]
    %v98 = vld [vmem:[#allocation5 + $0x1a0] sm:$0xff]
    %v99 = vld [vmem:[#allocation5 + $0x1a8] sm:$0xff]
    %v100 = vld [vmem:[#allocation5 + $0x1b0] sm:$0xff]
    %v101 = vld [vmem:[#allocation5 + $0x1b8] sm:$0xff]
    %v102 = vld [vmem:[#allocation5 + $0x1c0] sm:$0xff]
    %v103 = vld [vmem:[#allocation5 + $0x1c8] sm:$0xff]
    %v104 = vld [vmem:[#allocation5 + $0x1d0] sm:$0xff]
    %v105 = vld [vmem:[#allocation5 + $0x1d8] sm:$0xff]
    %v106 = vld [vmem:[#allocation5 + $0x1e0] sm:$0xff]
    %v107 = vld [vmem:[#allocation5 + $0x1e8] sm:$0xff]
    %v108 = vld [vmem:[#allocation5 + $0x1f0] sm:$0xff]
    %v109 = vld [vmem:[#allocation5 + $0x1f8] sm:$0xff]
    %v110 = vld [vmem:[%s2] sm:$0x3]
    %v112 = vlaneseq
    %v113 = vshrl.u32 %v112, 7
    %v114 = vsub.s32 0, %v113
    %v115 = vrot.slane %v110, %v114
    %v116 = vlaneseq
    %v117 = vshrl.u32 %v116, 7
    %v118 = vsub.s32 1, %v117
    %v119 = vrot.slane %v110, %v118
    %122 = vmatprep.subr.mxu0 %v47
    %123 = vmatpush1.msra.mxu0 %v46
    %124 = vmatprep.subr.mxu0 %v49
    %125 = vmatpush1.msra.mxu0 %v48
    %126 = vmatprep.subr.mxu0 %v51
    %127 = vmatpush1.msra.mxu0 %v50
    %128 = vmatprep.subr.mxu0 %v53
    %129 = vmatpush1.msra.mxu0 %v52
    %130 = vmatprep.subr.mxu0 %v55
    %131 = vmatpush1.msra.mxu0 %v54
    %132 = vmatprep.subr.mxu0 %v57
    %133 = vmatpush1.msra.mxu0 %v56
    %134 = vmatprep.subr.mxu0 %v59
    %135 = vmatpush1.msra.mxu0 %v58
    %136 = vmatprep.subr.mxu0 %v61
    %137 = vmatpush1.msra.mxu0 %v60
    %138 = vmatprep.subr.mxu0 %v63
    %139 = vmatpush1.msra.mxu0 %v62
    %140 = vmatprep.subr.mxu0 %v65
    %141 = vmatpush1.msra.mxu0 %v64
    %142 = vmatprep.subr.mxu0 %v67
    %143 = vmatpush1.msra.mxu0 %v66
    %144 = vmatprep.subr.mxu0 %v69
    %145 = vmatpush1.msra.mxu0 %v68
    %146 = vmatprep.subr.mxu0 %v71
    %147 = vmatpush1.msra.mxu0 %v70
    %148 = vmatprep.subr.mxu0 %v73
    %149 = vmatpush1.msra.mxu0 %v72
    %150 = vmatprep.subr.mxu0 %v75
    %151 = vmatpush1.msra.mxu0 %v74
    %152 = vmatprep.subr.mxu0 %v77
    %153 = vmatpush1.msra.mxu0 %v76
    %154 = vmatprep.subr.mxu0 %v79
    %155 = vmatpush1.msra.mxu0 %v78
    %156 = vmatprep.subr.mxu0 %v81
    %157 = vmatpush1.msra.mxu0 %v80
    %158 = vmatprep.subr.mxu0 %v83
    %159 = vmatpush1.msra.mxu0 %v82
    %160 = vmatprep.subr.mxu0 %v85
    %161 = vmatpush1.msra.mxu0 %v84
    %162 = vmatprep.subr.mxu0 %v87
    %163 = vmatpush1.msra.mxu0 %v86
    %164 = vmatprep.subr.mxu0 %v89
    %165 = vmatpush1.msra.mxu0 %v88
    %166 = vmatprep.subr.mxu0 %v91
    %167 = vmatpush1.msra.mxu0 %v90
    %168 = vmatprep.subr.mxu0 %v93
    %169 = vmatpush1.msra.mxu0 %v92
    %170 = vmatprep.subr.mxu0 %v95
    %171 = vmatpush1.msra.mxu0 %v94
    %172 = vmatprep.subr.mxu0 %v97
    %173 = vmatpush1.msra.mxu0 %v96
    %174 = vmatprep.subr.mxu0 %v99
    %175 = vmatpush1.msra.mxu0 %v98
    %176 = vmatprep.subr.mxu0 %v101
    %177 = vmatpush1.msra.mxu0 %v100
    %178 = vmatprep.subr.mxu0 %v103
    %179 = vmatpush1.msra.mxu0 %v102
    %180 = vmatprep.subr.mxu0 %v105
    %181 = vmatpush1.msra.mxu0 %v104
    %182 = vmatprep.subr.mxu0 %v107
    %183 = vmatpush1.msra.mxu0 %v106
    %184 = vmatprep.subr.mxu0 %v109
    %185 = vmatpush1.msra.mxu0 %v108
    %186 = vmatprep.mubr.f32.mxu0 %v45
    %187 = vmatmul.mubr.f32.gmra.mrb[0].mxu0 %v44
    %v188 = vpop.f32.mrb[0].mxu0
    %v189 = vadd.f32 %v115, %v188
    %v190 = vpop.f32.mrb[0].mxu0
    %v191 = vadd.f32 %v119, %v190
    %192 = vdwg.mxu0
    %193 = vmax.xlane.f32.xlu0 %v191
    %v194 = vpop.xlane.xlu0 %193
    %v195 = vsub.f32 %v191, %v194
    %v196 = vmul.f32 %v195, 1.442695
    %v197 = vpow.pop %v196
    %198 = vadd.xlane.f32.xlu0 %v197
    %v199 = vpop.xlane.xlu0 %198
    %v200 = vlog2.pop %v199
    %v201 = vmul.f32 %v200, 0.6931472
    %v202 = vsub.f32 %v195, %v201
    %203 = vst [vmem:[#allocation7] sm:$0xff] %v202
    %204 = vst [vmem:[#allocation8] sm:$0xff] %v189
    // Predicated region
    $region22: #{tpu_custom_call.1} parent=1 // pred_check
      _
    $region23: #{tpu_custom_call.1} parent=1 // pred_check_branch
      %206 = sbr.rel (0) target = $region25
    $region24: #{tpu_custom_call.1} parent=1 // pred_region
      %s208 = ssub.s32 128, 128
      %209 = vsyncadd [#allocation4], %s208
      %s211 = sshll.u32 [#allocation7], 4
      %s212 = int_to_ptr.vmem [resolvable:$true] %s211
      %214 = dma.vmem_to_hbm [thread:$0]  %s212, 128, %s3, [#allocation4]
    $region25: #{tpu_custom_call.1} parent=1 // pred_fallthru
      _
    // Predicated region
    $region26: #{tpu_custom_call.1} parent=1 // pred_check
      _
    $region27: #{tpu_custom_call.1} parent=1 // pred_check_branch
      %216 = sbr.rel (0) target = $region29
    $region28: #{tpu_custom_call.1} parent=1 // pred_region
      %s218 = ssub.s32 128, 128
      %219 = vsyncadd [#allocation9], %s218
      %s221 = sshll.u32 [#allocation8], 4
      %s222 = int_to_ptr.vmem [resolvable:$true] %s221
      %224 = dma.vmem_to_hbm [thread:$0]  %s222, 128, %s4, [#allocation9]
    $region29: #{tpu_custom_call.1} parent=1 // pred_fallthru
      _
    // Predicated region
    $region30: #{tpu_custom_call.1} parent=1 // pred_check
      _
    $region31: #{tpu_custom_call.1} parent=1 // pred_check_branch
      %226 = sbr.rel (0) target = $region33
    $region32: #{tpu_custom_call.1} parent=1 // pred_region
      %227 = dma.done [#allocation4], 128
    $region33: #{tpu_custom_call.1} parent=1 // pred_fallthru
      _
    // Predicated region
    $region34: #{tpu_custom_call.1} parent=1 // pred_check
      _
    $region35: #{tpu_custom_call.1} parent=1 // pred_check_branch
      %229 = sbr.rel (0) target = $region37
    $region36: #{tpu_custom_call.1} parent=1 // pred_region
      %230 = dma.done [#allocation9], 128
    $region37: #{tpu_custom_call.1} parent=1 // pred_fallthru
      _
    %231 = vsyncpa [#allocation3], 1
    %232 = vsyncpa [#allocation6], 1
    %233 = vsyncpa [#allocation4], 1
    %234 = vsyncpa [#allocation9], 1

</llo_original>
